<compile_context>
chip_gen: v7x
topology: tpu7x:2x2x1
jax: 0.10.0
libtpu: 0.0.40
codegen_flags: <defaults>
</compile_context>

<pallas_src>
import functools

import jax
import jax.numpy as jnp
from jax.experimental import pallas as pl
from jax.experimental.pallas import tpu as pltpu

_EPS = 1e-5
_LANE = 128
_TARGET_ROWS = 512            # target matmul rows per in-kernel chunk (review: 256-512)

_VMEM_LIMIT_CACHE = None


def _round_up(n, m):
    return ((n + m - 1) // m) * m


def _pick_tile(n, cap):
    """Largest divisor of n that is <= cap (>= 1)."""
    cap = max(1, min(n, cap))
    for t in range(cap, 0, -1):
        if n % t == 0:
            return t
    return 1


def _vmem_limit():
    """Per-generation scoped-VMEM budget (~96-112 MiB on v5e/v6e, ~48-56 MiB on v7x)."""
    global _VMEM_LIMIT_CACHE
    if _VMEM_LIMIT_CACHE is not None:
        return _VMEM_LIMIT_CACHE
    cap = None
    try:
        info = pltpu.get_tpu_info()
        for name in ("vmem_capacity_bytes", "vmem_bytes", "vmem_size_bytes"):
            cap = getattr(info, name, None)
            if cap:
                break
    except Exception:
        cap = None
    try:
        kind = jax.devices()[0].device_kind.lower()
    except Exception:
        kind = ""
    is_v7 = "7" in kind
    if cap:
        limit = int(cap * 0.85)
    else:
        limit = (48 if is_v7 else 100) * 1024 * 1024
    hard = (56 if is_v7 else 112) * 1024 * 1024
    _VMEM_LIMIT_CACHE = max(32 * 1024 * 1024, min(limit, hard))
    return _VMEM_LIMIT_CACHE


def _const_spec(block_shape, index_map):
    """BlockSpec for grid-invariant operands; single-buffered when supported."""
    try:
        return pl.BlockSpec(block_shape, index_map,
                            pipeline_mode=pl.Buffered(buffer_count=1))
    except Exception:
        return pl.BlockSpec(block_shape, index_map)


# ----------------------------- Pallas kernels ------------------------------ #

def _stats_kernel(x_ref, o_ref):
    """Per-channel sum / sum-of-squares over (TM, C) row tiles (runs ONCE, as seed)."""
    @pl.when(pl.program_id(0) == 0)
    def _init():
        o_ref[...] = jnp.zeros_like(o_ref)

    x = x_ref[...]
    o_ref[...] += jnp.concatenate(
        [jnp.sum(x, axis=0, keepdims=True),
         jnp.sum(x * x, axis=0, keepdims=True)], axis=0)


def _dense_layer_kernel(xp_ref, sb_ref, w_ref, o_ref, st_ref, acc_ref, *,
                        rh, hh, ww, ws, gwin):
    """Fused BN-apply + ReLU + 3x3 ConvTranspose (== 'same' conv with flipped
    weights) + concat + growth-channel BN-stats, for one image of the padded slab.

      xp_ref : (1, H+2, W+2, C) f32   persistent padded slab (aliased with o_ref)
      sb_ref : (2, C)  f32            row0 = gamma*rsqrt(var+eps), row1 = beta - mean*scale
      w_ref  : (9, C, Gwin) bf16      flipped convT taps, narrowed to the 128-aligned
                                      lane window [ws, ws+Gwin) holding the growth channels
      o_ref  : (1, H+2, W+2, C) f32   updated slab (old channels + halo persist)
      st_ref : (1, 2, Gwin) f32       per-image partial sum / sumsq of the new features
      acc_ref: (rh*W, Gwin) f32       VMEM accumulator scratch
    """
    c = xp_ref.shape[-1]

    # persist halo + old channels: the whole padded block is written back (aliased).
    o_ref[...] = xp_ref[...]

    sb = sb_ref[...]
    scale = sb[0:1, :].reshape(1, 1, c)
    bias = sb[1:2, :].reshape(1, 1, c)

    s_tot = jnp.zeros((1, gwin), jnp.float32)
    s2_tot = jnp.zeros((1, gwin), jnp.float32)

    for c0 in range(0, hh, rh):                       # static chunk loop over image rows
        xw = xp_ref[0, c0:c0 + rh + 2, :, :]          # (rh+2, W+2, C) padded-row window
        act = jnp.maximum(xw * scale + bias, 0.0)

        # zero the conv's zero-padding ring (relu(bias) must not leak into taps)
        prow = c0 + jax.lax.broadcasted_iota(jnp.int32, (rh + 2, ww + 2, 1), 0)
        pcol = jax.lax.broadcasted_iota(jnp.int32, (rh + 2, ww + 2, 1), 1)
        interior = (prow >= 1) & (prow <= hh) & (pcol >= 1) & (pcol <= ww)
        act = jnp.where(interior, act, 0.0).astype(jnp.bfloat16)

        acc_ref[...] = jnp.zeros_like(acc_ref)
        # hoist the sublane (column) shift out of the kh loop: 3 materializations,
        # the 9 taps then only slice the major (row) axis.
        for kw in range(3):
            a_kw = act[:, kw:kw + ww, :].reshape((rh + 2) * ww, c)
            for kh in range(3):
                a = a_kw[kh * ww:(kh + rh) * ww, :]
                acc_ref[...] += jnp.dot(a, w_ref[kh * 3 + kw],
                                        preferred_element_type=jnp.float32)

        new = acc_ref[...]                            # (rh*W, Gwin); zero in old-channel lanes
        s_tot = s_tot + jnp.sum(new, axis=0, keepdims=True)
        s2_tot = s2_tot + jnp.sum(new * new, axis=0, keepdims=True)

        # place into the slab interior at the lane-group-aligned growth window
        o_ref[0, c0 + 1:c0 + 1 + rh, 1:ww + 1, ws:ws + gwin] = (
            xp_ref[0, c0 + 1:c0 + 1 + rh, 1:ww + 1, ws:ws + gwin]
            + new.reshape(rh, ww, gwin))

    st_ref[...] = jnp.concatenate([s_tot, s2_tot], axis=0).reshape(1, 2, gwin)


def _final_kernel(xp_ref, sb_ref, w_ref, o_ref, *, rh, hh, ww):
    """Fused BN-apply + ReLU + 1x1 ConvTranspose (channel matmul) on one image."""
    c = xp_ref.shape[-1]
    f = o_ref.shape[-1]
    sb = sb_ref[...]
    scale = sb[0:1, :].reshape(1, 1, c)
    bias = sb[1:2, :].reshape(1, 1, c)
    for c0 in range(0, hh, rh):
        x = xp_ref[0, c0 + 1:c0 + 1 + rh, 1:ww + 1, :]
        act = jnp.maximum(x * scale + bias, 0.0).astype(jnp.bfloat16)
        out = jnp.dot(act.reshape(rh * ww, c), w_ref[...],
                      preferred_element_type=jnp.float32)
        o_ref[0, c0:c0 + rh, :, :] = out.reshape(rh, ww, f)


# ------------------------------ kernel wrappers ----------------------------- #

def channel_sums(x2):
    """x2: (M, C) f32 -> (2, C) f32 [sum; sumsq]. Runs once to seed the BN stats."""
    m, c = x2.shape
    tm = min(1024, _round_up(m, 8))
    mp = _round_up(m, tm)
    if mp != m:
        x2 = jnp.pad(x2, ((0, mp - m), (0, 0)))       # zero rows don't perturb sums
    return pl.pallas_call(
        _stats_kernel,
        out_shape=jax.ShapeDtypeStruct((2, c), jnp.float32),
        grid=(mp // tm,),
        in_specs=[pl.BlockSpec((tm, c), lambda i: (i, 0))],
        out_specs=pl.BlockSpec((2, c), lambda i: (0, 0)),
        compiler_params=pltpu.CompilerParams(
            dimension_semantics=("arbitrary",),
            vmem_limit_bytes=_vmem_limit()),
    )(x2)


def _scale_bias(sums, m, gamma_p, beta_p):
    """Fold batch stats + affine into per-channel scale/bias (tiny, plain JAX)."""
    mean = sums[0] / m
    var = jnp.maximum(sums[1] / m - mean * mean, 0.0)   # biased var (training BN)
    scale = gamma_p * jax.lax.rsqrt(var + _EPS)
    bias = beta_p - mean * scale
    return jnp.stack([scale, bias]).astype(jnp.float32)  # (2, C)


def dense_layer_step(xp, sb, w_full, *, hh, ww, ws):
    """xp: (N, H+2, W+2, Cpad) padded slab -> (updated slab, per-image growth stats)."""
    n, _, _, c = xp.shape
    gwin = w_full.shape[-1]
    rh = _pick_tile(hh, max(1, _TARGET_ROWS // ww))
    kernel = functools.partial(_dense_layer_kernel, rh=rh, hh=hh, ww=ww,
                               ws=ws, gwin=gwin)
    return pl.pallas_call(
        kernel,
        out_shape=(jax.ShapeDtypeStruct(xp.shape, xp.dtype),
                   jax.ShapeDtypeStruct((n, 2, gwin), jnp.float32)),
        grid=(n,),
        in_specs=[
            pl.BlockSpec((1, hh + 2, ww + 2, c), lambda b: (b, 0, 0, 0)),
            _const_spec((2, c), lambda b: (0, 0)),
            _const_spec((9, c, gwin), lambda b: (0, 0, 0)),
        ],
        out_specs=(
            pl.BlockSpec((1, hh + 2, ww + 2, c), lambda b: (b, 0, 0, 0)),
            pl.BlockSpec((1, 2, gwin), lambda b: (b, 0, 0)),
        ),
        scratch_shapes=[pltpu.VMEM((rh * ww, gwin), jnp.float32)],
        input_output_aliases={0: 0},                   # slab updated in place in HBM
        compiler_params=pltpu.CompilerParams(
            dimension_semantics=("parallel",),
            vmem_limit_bytes=_vmem_limit()),
    )(xp, sb, w_full)


def final_step(xp, sb, w_full, *, hh, ww):
    n, _, _, c = xp.shape
    fpad = w_full.shape[1]
    rh = _pick_tile(hh, max(1, _TARGET_ROWS // ww))
    kernel = functools.partial(_final_kernel, rh=rh, hh=hh, ww=ww)
    return pl.pallas_call(
        kernel,
        out_shape=jax.ShapeDtypeStruct((n, hh, ww, fpad), jnp.float32),
        grid=(n,),
        in_specs=[
            pl.BlockSpec((1, hh + 2, ww + 2, c), lambda b: (b, 0, 0, 0)),
            _const_spec((2, c), lambda b: (0, 0)),
            _const_spec((c, fpad), lambda b: (0, 0)),
        ],
        out_specs=pl.BlockSpec((1, hh, ww, fpad), lambda b: (b, 0, 0, 0)),
        compiler_params=pltpu.CompilerParams(
            dimension_semantics=("parallel",),
            vmem_limit_bytes=_vmem_limit()),
    )(xp, sb, w_full)


# --------------------------------- forward ---------------------------------- #

def dense_forward(x_nchw, params):
    n, cin, h, w = x_nchw.shape
    cpad = params["cpad"]
    out_feat = params["out_feat"]
    m = n * h * w

    x = jnp.transpose(x_nchw, (0, 2, 3, 1))                        # NHWC once
    x = jnp.pad(x, ((0, 0), (0, 0), (0, 0), (0, cpad - cin)))      # lane-align once
    running = channel_sums(x.reshape(m, cpad))                     # seed BN stats (one pass)
    xp = jnp.pad(x, ((0, 0), (1, 1), (1, 1), (0, 0)))              # one-time halo pad

    for lp in params["layers"]:
        sb = _scale_bias(running, m, lp["gamma_p"], lp["beta_p"])
        xp, st = dense_layer_step(xp, sb, lp["w_full"],
                                  hh=h, ww=w, ws=lp["win_start"])
        ws, gwin = lp["win_start"], lp["gwin"]
        running = running.at[:, ws:ws + gwin].add(jnp.sum(st, axis=0))

    fp = params["final"]
    sb = _scale_bias(running, m, fp["gamma_p"], fp["beta_p"])
    out = final_step(xp, sb, fp["w_full"], hh=h, ww=w)             # (N, H, W, Fpad)
    out = out[..., :out_feat]
    return jnp.transpose(out, (0, 3, 1, 2))                        # back to NCHW


# --------------------------- deterministic params --------------------------- #

def _pad_vec(v, cpad):
    return jnp.zeros((cpad,), jnp.float32).at[: v.shape[0]].set(v)


def _convT3x3_weight(w_ct, cpad, cin_offset):
    """ConvTranspose2d weight (Cin, G, 3, 3) -> (9, Cpad, Gwin) bf16 taps of the
    equivalent forward conv (spatially flipped, in/out swapped).  Gwin is the
    128-lane-aligned window [ws, ws+Gwin) of the slab that contains the growth
    channels [cin_offset, cin_offset+G); old-channel columns of the window are zero."""
    cin, g = w_ct.shape[0], w_ct.shape[1]
    ws = (cin_offset // _LANE) * _LANE
    we = _round_up(cin_offset + g, _LANE)
    gwin = we - ws
    w_eq = jnp.flip(jnp.transpose(w_ct, (2, 3, 0, 1)), axis=(0, 1))   # (3,3,Cin,G)
    w_full = jnp.zeros((9, cpad, gwin), jnp.float32)
    col = cin_offset - ws
    w_full = w_full.at[:, :cin, col:col + g].set(w_eq.reshape(9, cin, g))
    return w_full.astype(jnp.bfloat16), ws, gwin


def _convT1x1_weight(w_ct, cpad, fpad):
    cin, cout = w_ct.shape[0], w_ct.shape[1]
    w_full = jnp.zeros((cpad, fpad), jnp.float32)
    w_full = w_full.at[:cin, :cout].set(w_ct[:, :, 0, 0])
    return w_full.astype(jnp.bfloat16)


def init_params(key, num_layers, in_feat, growth_rate, out_feat):
    cfinal = in_feat + num_layers * growth_rate
    cpad = _round_up(cfinal, _LANE)
    fpad = _round_up(out_feat, _LANE)

    layers = []
    c = in_feat
    for _ in range(num_layers):
        key, k1, k2, k3 = jax.random.split(key, 4)
        gamma = 1.0 + 0.1 * jax.random.normal(k1, (c,), jnp.float32)
        beta = 0.1 * jax.random.normal(k2, (c,), jnp.float32)
        w_ct = 0.1 * jax.random.normal(k3, (c, growth_rate, 3, 3), jnp.float32)
        w_full, ws, gwin = _convT3x3_weight(w_ct, cpad, c)
        layers.append({
            "gamma": gamma, "beta": beta, "w_ct": w_ct,
            "gamma_p": _pad_vec(gamma, cpad), "beta_p": _pad_vec(beta, cpad),
            "w_full": w_full, "win_start": ws, "gwin": gwin,
        })
        c += growth_rate

    key, k1, k2, k3 = jax.random.split(key, 4)
    gamma = 1.0 + 0.1 * jax.random.normal(k1, (c,), jnp.float32)
    beta = 0.1 * jax.random.normal(k2, (c,), jnp.float32)
    w_ct = 0.1 * jax.random.normal(k3, (c, out_feat, 1, 1), jnp.float32)
    final = {
        "gamma": gamma, "beta": beta, "w_ct": w_ct,
        "gamma_p": _pad_vec(gamma, cpad), "beta_p": _pad_vec(beta, cpad),
        "w_full": _convT1x1_weight(w_ct, cpad, fpad),
    }
    return {"layers": layers, "final": final,
            "cpad": cpad, "fpad": fpad,
            "in_feat": in_feat, "out_feat": out_feat}


# ------------------------- pure-JAX reference (NCHW) ------------------------ #

def _bf16_round(x, emulate):
    return x.astype(jnp.bfloat16).astype(jnp.float32) if emulate else x


def _ref_bn_relu(x, gamma, beta):
    mean = jnp.mean(x, axis=(0, 2, 3), keepdims=True)
    var = jnp.mean((x - mean) ** 2, axis=(0, 2, 3), keepdims=True)
    y = (x - mean) / jnp.sqrt(var + _EPS)
    y = y * gamma[None, :, None, None] + beta[None, :, None, None]
    return jnp.maximum(y, 0.0)


def _ref_convT(x, w_ct, ksize, padding, emulate_bf16):
    n, cin, h, w = x.shape
    cout = w_ct.shape[1]
    p = ksize - 1 - padding
    hout = h - 1 - 2 * padding + ksize
    wout = w - 1 - 2 * padding + ksize
    xp = jnp.pad(_bf16_round(x, emulate_bf16), ((0, 0), (0, 0), (p, p), (p, p)))
    w_flip = _bf16_round(jnp.flip(w_ct, axis=(2, 3)), emulate_bf16)
    out = jnp.zeros((n, cout, hout, wout), jnp.float32)
    for kh in range(ksize):
        for kw in range(ksize):
            out = out + jnp.einsum("nchw,cd->ndhw",
                                   xp[:, :, kh:kh + hout, kw:kw + wout],
                                   w_flip[:, :, kh, kw],
                                   precision=jax.lax.Precision.HIGHEST)
    return out


def ref_dense(x, layer_params, final_params, emulate_bf16=False):
    for p in layer_params:
        y = _ref_bn_relu(x, p["gamma"], p["beta"])
        nf = _ref_convT(y, p["w_ct"], 3, 1, emulate_bf16)
        x = jnp.concatenate([x, nf], axis=1)
    y = _ref_bn_relu(x, final_params["gamma"], final_params["beta"])
    return _ref_convT(y, final_params["w_ct"], 1, 0, emulate_bf16)


# ----------------------------------- main ----------------------------------- #

if __name__ == "__main__":
    N, Cin, H, W = 2, 4, 16, 16
    num_layers, growth, out_feat = 2, 4, 8

    root = jax.random.PRNGKey(0)
    kx, kp = jax.random.split(root)
    x = jax.random.normal(kx, (N, Cin, H, W), jnp.float32)
    params = init_params(kp, num_layers, Cin, growth, out_feat)

    out = dense_forward(x, params)
    out = jax.block_until_ready(out)
    assert out.shape == (N, out_feat, H, W), out.shape

    # Strict check against a reference that applies the same bf16 rounding to the
    # MXU operands (isolates implementation/indexing errors from the precision choice).
    ref_strict = ref_dense(x, params["layers"], params["final"], emulate_bf16=True)
    err_strict = float(jnp.max(jnp.abs(out - ref_strict)))
    assert err_strict < 3e-3, f"mismatch vs bf16-operand reference: {err_strict}"

    # Loose sanity check against the full-f32 reference (bf16 MXU operands trade a
    # few % of accuracy for MXU throughput, per the performance review).
    ref_f32 = ref_dense(x, params["layers"], params["final"], emulate_bf16=False)
    err_f32 = float(jnp.max(jnp.abs(out - ref_f32)))
    assert err_f32 < 1e-1, f"mismatch vs f32 reference: {err_f32}"

    print("KERNEL_OK")
</pallas_src>

<mosaic_0001>
module attributes {stable_mosaic.version = 11 : i64} {
  func.func @_stats_kernel(%arg0: i32, %arg1: memref<512x128xf32, #tpu.memory_space<vmem>>, %arg2: memref<2x128xf32, #tpu.memory_space<vmem>>) attributes {dimension_semantics = [#tpu.dimension_semantics<arbitrary>], iteration_bounds = array<i64: 1>, scalar_prefetch = 0 : i64, scratch_operands = 0 : i64, tpu.core_type = #tpu.core_type<tc>, window_params = [{transform_indices = @transform_0, window_bounds = array<i64: 512, 128>}, {pipeline_mode = #tpu.pipeline_mode<synchronous>, transform_indices = @transform_1, window_bounds = array<i64: 2, 128>}]} {
    %c0_i32 = arith.constant 0 : i32
    %0 = arith.cmpi eq, %arg0, %c0_i32 : i32
    %1 = arith.extui %0 : i1 to i32
    %c0_i32_0 = arith.constant 0 : i32
    %2 = arith.cmpi ne, %1, %c0_i32_0 : i32
    scf.if %2 {
      %cst_7 = arith.constant 0.000000e+00 : f32
      %13 = vector.broadcast %cst_7 : f32 to vector<2x128xf32>
      %c0_8 = arith.constant 0 : index
      %c0_9 = arith.constant 0 : index
      %14 = vector.load %arg2[%c0_8, %c0_9] : memref<2x128xf32, #tpu.memory_space<vmem>>, vector<2x128xf32>
      tpu.vector_store %arg2[%c0_8, %c0_9], %13 {strides = array<i32>} : memref<2x128xf32, #tpu.memory_space<vmem>>, vector<2x128xf32>,
    } else {
    }
    %c0 = arith.constant 0 : index
    %c0_1 = arith.constant 0 : index
    %3 = vector.load %arg1[%c0, %c0_1] : memref<512x128xf32, #tpu.memory_space<vmem>>, vector<512x128xf32>
    %c0_2 = arith.constant 0 : index
    %c0_3 = arith.constant 0 : index
    %4 = vector.load %arg2[%c0_2, %c0_3] : memref<2x128xf32, #tpu.memory_space<vmem>>, vector<2x128xf32>
    %cst = arith.constant dense<0.000000e+00> : vector<128xf32>
    %5 = vector.multi_reduction <add>, %3, %cst [0] : vector<512x128xf32> to vector<128xf32>
    %6 = vector.shape_cast %5 : vector<128xf32> to vector<1x128xf32>
    %7 = arith.mulf %3, %3 : vector<512x128xf32>
    %cst_4 = arith.constant dense<0.000000e+00> : vector<128xf32>
    %8 = vector.multi_reduction <add>, %7, %cst_4 [0] : vector<512x128xf32> to vector<128xf32>
    %9 = vector.shape_cast %8 : vector<128xf32> to vector<1x128xf32>
    %10 = tpu.concatenate %6, %9 in 0 : vector<1x128xf32>, vector<1x128xf32> -> vector<2x128xf32>
    %11 = arith.addf %4, %10 : vector<2x128xf32>
    %c0_5 = arith.constant 0 : index
    %c0_6 = arith.constant 0 : index
    %12 = vector.load %arg2[%c0_5, %c0_6] : memref<2x128xf32, #tpu.memory_space<vmem>>, vector<2x128xf32>
    tpu.vector_store %arg2[%c0_5, %c0_6], %11 {strides = array<i32>} : memref<2x128xf32, #tpu.memory_space<vmem>>, vector<2x128xf32>,
    return
  }
  func.func @transform_0(%arg0: i32) -> (i32, i32) {
    %c0_i32 = arith.constant 0 : i32
    %c0_i32_0 = arith.constant 0 : i32
    return %arg0, %c0_i32 : i32, i32
  }
  func.func @transform_1(%arg0: i32) -> (i32, i32) {
    %c0_i32 = arith.constant 0 : i32
    %c0_i32_0 = arith.constant 0 : i32
    %c0_i32_1 = arith.constant 0 : i32
    return %c0_i32, %c0_i32_0 : i32, i32
  }
}

</mosaic_0001>

<llo_original>
// kernel: tpu_custom_call.1
$region0: #{tpu_custom_call.1}
  #allocation0 [shape = 'u32[]', space=smem, size = 0x4, offset = 0x4, fixed_abs, tag = 'smem constant byte address 0x4 - core index']
  #allocation1 [shape = 'u32[144,128]{1,0:T(1,128)}', space=vmem, size = 0x12000, scoped, tag = 'internal scratch']
  %s0 = inlined_call_operand.hbm [shape: f32[512,128], index: 0, kind: input, shape index: {}]
  %s1 = inlined_call_operand.hbm [shape: f32[2,128], index: 1, kind: output, shape index: {}]
  %s2 = sld [smem:[#allocation0]]
  $region22: #{tpu_custom_call.1} parent=0
    _
  %s4 = ssub.s32 1, %s2
  %s5 = scalar_select 0, %s4, %s2
  $region1: #{tpu_custom_call.1} parent=0
    #allocation2 [shape = 'u8[262144]{0}', space=vmem, size = 0x40000, scoped, tag = 'input window, operand 0, single buffered']
    #allocation3 [shape = 's32[1]{0}', space=sflag, size = 0x4, scoped, tag = 'scoped memory for tpu_custom_call.1']
    #allocation4 [shape = 's32[1]{0}', space=sflag, size = 0x4, scoped, tag = 'scoped memory for tpu_custom_call.1']
    #allocation5 [shape = 'u8[1024]{0}', space=vmem, size = 0x400, scoped, tag = 'output window, operand 0, single buffered']
    %6 = vsyncpa [#allocation3], 0
    %7 = vsyncpa [#allocation4], 0
    // Predicated region
    $region2: #{tpu_custom_call.1} parent=1 // pred_check
      _
    $region3: #{tpu_custom_call.1} parent=1 // pred_check_branch
      %9 = sbr.rel (0) target = $region5
    $region4: #{tpu_custom_call.1} parent=1 // pred_region
      %s11 = ssub.s32 8192, 8192
      %12 = vsyncadd [#allocation3], %s11
      %s13 = sshll.u32 [#allocation2], 4
      %s14 = int_to_ptr.vmem [resolvable:$true] %s13
      %19 = dma.hbm_to_vmem [thread:$0]  %s0, 8192, %s14, [#allocation3], 128, 128, 8
    $region5: #{tpu_custom_call.1} parent=1 // pred_fallthru
      _
    // Predicated region
    $region6: #{tpu_custom_call.1} parent=1 // pred_check
      _
    $region7: #{tpu_custom_call.1} parent=1 // pred_check_branch
      %21 = sbr.rel (0) target = $region9
    $region8: #{tpu_custom_call.1} parent=1 // pred_region
      %22 = dma.done [#allocation3], 8192
    $region9: #{tpu_custom_call.1} parent=1 // pred_fallthru
      _
    %p23 = scmp.eq.s32.totalorder 0, 0
    // Predicated region
    $region10: #{tpu_custom_call.1} parent=1 // pred_check
      %p24 = pneg %p23
    $region11: #{tpu_custom_call.1} parent=1 // pred_check_branch
      %26 = sbr.rel (%p24) target = $region13
    $region12: #{tpu_custom_call.1} parent=1 // pred_region
      %27 = vst [vmem:[#allocation5] sm:$0x3] 0.0
    $region13: #{tpu_custom_call.1} parent=1 // pred_fallthru
      _
    %v28 = vld [vmem:[#allocation2] sm:$0xff]
    %v29 = vld [vmem:[#allocation2 + $0x8] sm:$0xff]
    %v30 = vld [vmem:[#allocation2 + $0x10] sm:$0xff]
    %v31 = vld [vmem:[#allocation2 + $0x18] sm:$0xff]
    %v32 = vld [vmem:[#allocation2 + $0x20] sm:$0xff]
    %v33 = vld [vmem:[#allocation2 + $0x28] sm:$0xff]
    %v34 = vld [vmem:[#allocation2 + $0x30] sm:$0xff]
    %v35 = vld [vmem:[#allocation2 + $0x38] sm:$0xff]
    %v36 = vld [vmem:[#allocation2 + $0x40] sm:$0xff]
    %v37 = vld [vmem:[#allocation2 + $0x48] sm:$0xff]
    %v38 = vld [vmem:[#allocation2 + $0x50] sm:$0xff]
    %v39 = vld [vmem:[#allocation2 + $0x58] sm:$0xff]
    %v40 = vld [vmem:[#allocation2 + $0x60] sm:$0xff]
    %v41 = vld [vmem:[#allocation2 + $0x68] sm:$0xff]
    %v42 = vld [vmem:[#allocation2 + $0x70] sm:$0xff]
    %v43 = vld [vmem:[#allocation2 + $0x78] sm:$0xff]
    %v44 = vld [vmem:[#allocation2 + $0x80] sm:$0xff]
    %v45 = vld [vmem:[#allocation2 + $0x88] sm:$0xff]
    %v46 = vld [vmem:[#allocation2 + $0x90] sm:$0xff]
    %v47 = vld [vmem:[#allocation2 + $0x98] sm:$0xff]
    %v48 = vld [vmem:[#allocation2 + $0xa0] sm:$0xff]
    %v49 = vld [vmem:[#allocation2 + $0xa8] sm:$0xff]
    %v50 = vld [vmem:[#allocation2 + $0xb0] sm:$0xff]
    %v51 = vld [vmem:[#allocation2 + $0xb8] sm:$0xff]
    %v52 = vld [vmem:[#allocation2 + $0xc0] sm:$0xff]
    %v53 = vld [vmem:[#allocation2 + $0xc8] sm:$0xff]
    %v54 = vld [vmem:[#allocation2 + $0xd0] sm:$0xff]
    %v55 = vld [vmem:[#allocation2 + $0xd8] sm:$0xff]
    %v56 = vld [vmem:[#allocation2 + $0xe0] sm:$0xff]
    %v57 = vld [vmem:[#allocation2 + $0xe8] sm:$0xff]
    %v58 = vld [vmem:[#allocation2 + $0xf0] sm:$0xff]
    %v59 = vld [vmem:[#allocation2 + $0xf8] sm:$0xff]
    %v60 = vld [vmem:[#allocation2 + $0x100] sm:$0xff]
    %v61 = vld [vmem:[#allocation2 + $0x108] sm:$0xff]
    %v62 = vld [vmem:[#allocation2 + $0x110] sm:$0xff]
    %v63 = vld [vmem:[#allocation2 + $0x118] sm:$0xff]
    %v64 = vld [vmem:[#allocation2 + $0x120] sm:$0xff]
    %v65 = vld [vmem:[#allocation2 + $0x128] sm:$0xff]
    %v66 = vld [vmem:[#allocation2 + $0x130] sm:$0xff]
    %v67 = vld [vmem:[#allocation2 + $0x138] sm:$0xff]
    %v68 = vld [vmem:[#allocation2 + $0x140] sm:$0xff]
    %v69 = vld [vmem:[#allocation2 + $0x148] sm:$0xff]
    %v70 = vld [vmem:[#allocation2 + $0x150] sm:$0xff]
    %v71 = vld [vmem:[#allocation2 + $0x158] sm:$0xff]
    %v72 = vld [vmem:[#allocation2 + $0x160] sm:$0xff]
    %v73 = vld [vmem:[#allocation2 + $0x168] sm:$0xff]
    %v74 = vld [vmem:[#allocation2 + $0x170] sm:$0xff]
    %v75 = vld [vmem:[#allocation2 + $0x178] sm:$0xff]
    %v76 = vld [vmem:[#allocation2 + $0x180] sm:$0xff]
    %v77 = vld [vmem:[#allocation2 + $0x188] sm:$0xff]
    %v78 = vld [vmem:[#allocation2 + $0x190] sm:$0xff]
    %v79 = vld [vmem:[#allocation2 + $0x198] sm:$0xff]
    %v80 = vld [vmem:[#allocation2 + $0x1a0] sm:$0xff]
    %v81 = vld [vmem:[#allocation2 + $0x1a8] sm:$0xff]
    %v82 = vld [vmem:[#allocation2 + $0x1b0] sm:$0xff]
    %v83 = vld [vmem:[#allocation2 + $0x1b8] sm:$0xff]
    %v84 = vld [vmem:[#allocation2 + $0x1c0] sm:$0xff]
    %v85 = vld [vmem:[#allocation2 + $0x1c8] sm:$0xff]
    %v86 = vld [vmem:[#allocation2 + $0x1d0] sm:$0xff]
    %v87 = vld [vmem:[#allocation2 + $0x1d8] sm:$0xff]
    %v88 = vld [vmem:[#allocation2 + $0x1e0] sm:$0xff]
    %v89 = vld [vmem:[#allocation2 + $0x1e8] sm:$0xff]
    %v90 = vld [vmem:[#allocation2 + $0x1f0] sm:$0xff]
    %v91 = vld [vmem:[#allocation2 + $0x1f8] sm:$0xff]
    %v92 = vld [vmem:[#allocation5] sm:$0x3]
    %v93 = vadd.f32 %v28, %v29
    %v94 = vadd.f32 %v93, %v30
    %v95 = vadd.f32 %v94, %v31
    %v96 = vadd.f32 %v95, %v32
    %v97 = vadd.f32 %v96, %v33
    %v98 = vadd.f32 %v97, %v34
    %v99 = vadd.f32 %v98, %v35
    %v100 = vadd.f32 %v99, %v36
    %v101 = vadd.f32 %v100, %v37
    %v102 = vadd.f32 %v101, %v38
    %v103 = vadd.f32 %v102, %v39
    %v104 = vadd.f32 %v103, %v40
    %v105 = vadd.f32 %v104, %v41
    %v106 = vadd.f32 %v105, %v42
    %v107 = vadd.f32 %v106, %v43
    %v108 = vadd.f32 %v107, %v44
    %v109 = vadd.f32 %v108, %v45
    %v110 = vadd.f32 %v109, %v46
    %v111 = vadd.f32 %v110, %v47
    %v112 = vadd.f32 %v111, %v48
    %v113 = vadd.f32 %v112, %v49
    %v114 = vadd.f32 %v113, %v50
    %v115 = vadd.f32 %v114, %v51
    %v116 = vadd.f32 %v115, %v52
    %v117 = vadd.f32 %v116, %v53
    %v118 = vadd.f32 %v117, %v54
    %v119 = vadd.f32 %v118, %v55
    %v120 = vadd.f32 %v119, %v56
    %v121 = vadd.f32 %v120, %v57
    %v122 = vadd.f32 %v121, %v58
    %v123 = vadd.f32 %v122, %v59
    %v124 = vadd.f32 %v123, %v60
    %v125 = vadd.f32 %v124, %v61
    %v126 = vadd.f32 %v125, %v62
    %v127 = vadd.f32 %v126, %v63
    %v128 = vadd.f32 %v127, %v64
    %v129 = vadd.f32 %v128, %v65
    %v130 = vadd.f32 %v129, %v66
    %v131 = vadd.f32 %v130, %v67
    %v132 = vadd.f32 %v131, %v68
    %v133 = vadd.f32 %v132, %v69
    %v134 = vadd.f32 %v133, %v70
    %v135 = vadd.f32 %v134, %v71
    %v136 = vadd.f32 %v135, %v72
    %v137 = vadd.f32 %v136, %v73
    %v138 = vadd.f32 %v137, %v74
    %v139 = vadd.f32 %v138, %v75
    %v140 = vadd.f32 %v139, %v76
    %v141 = vadd.f32 %v140, %v77
    %v142 = vadd.f32 %v141, %v78
    %v143 = vadd.f32 %v142, %v79
    %v144 = vadd.f32 %v143, %v80
    %v145 = vadd.f32 %v144, %v81
    %v146 = vadd.f32 %v145, %v82
    %v147 = vadd.f32 %v146, %v83
    %v148 = vadd.f32 %v147, %v84
    %v149 = vadd.f32 %v148, %v85
    %v150 = vadd.f32 %v149, %v86
    %v151 = vadd.f32 %v150, %v87
    %v152 = vadd.f32 %v151, %v88
    %v153 = vadd.f32 %v152, %v89
    %v154 = vadd.f32 %v153, %v90
    %v155 = vadd.f32 %v154, %v91
    %v156 = vrot.slane %v155, 4
    %v157 = vadd.f32 %v155, %v156
    %v158 = vrot.slane %v157, 2
    %v159 = vadd.f32 %v157, %v158
    %v160 = vrot.slane %v159, 1
    %v161 = vadd.f32 %v159, %v160
    %v162 = vmul.f32 %v28, %v28
    %v163 = vmul.f32 %v29, %v29
    %v164 = vmul.f32 %v30, %v30
    %v165 = vmul.f32 %v31, %v31
    %v166 = vmul.f32 %v32, %v32
    %v167 = vmul.f32 %v33, %v33
    %v168 = vmul.f32 %v34, %v34
    %v169 = vmul.f32 %v35, %v35
    %v170 = vmul.f32 %v36, %v36
    %v171 = vmul.f32 %v37, %v37
    %v172 = vmul.f32 %v38, %v38
    %v173 = vmul.f32 %v39, %v39
    %v174 = vmul.f32 %v40, %v40
    %v175 = vmul.f32 %v41, %v41
    %v176 = vmul.f32 %v42, %v42
    %v177 = vmul.f32 %v43, %v43
    %v178 = vmul.f32 %v44, %v44
    %v179 = vmul.f32 %v45, %v45
    %v180 = vmul.f32 %v46, %v46
    %v181 = vmul.f32 %v47, %v47
    %v182 = vmul.f32 %v48, %v48
    %v183 = vmul.f32 %v49, %v49
    %v184 = vmul.f32 %v50, %v50
    %v185 = vmul.f32 %v51, %v51
    %v186 = vmul.f32 %v52, %v52
    %v187 = vmul.f32 %v53, %v53
    %v188 = vmul.f32 %v54, %v54
    %v189 = vmul.f32 %v55, %v55
    %v190 = vmul.f32 %v56, %v56
    %v191 = vmul.f32 %v57, %v57
    %v192 = vmul.f32 %v58, %v58
    %v193 = vmul.f32 %v59, %v59
    %v194 = vmul.f32 %v60, %v60
    %v195 = vmul.f32 %v61, %v61
    %v196 = vmul.f32 %v62, %v62
    %v197 = vmul.f32 %v63, %v63
    %v198 = vmul.f32 %v64, %v64
    %v199 = vmul.f32 %v65, %v65
    %v200 = vmul.f32 %v66, %v66
    %v201 = vmul.f32 %v67, %v67
    %v202 = vmul.f32 %v68, %v68
    %v203 = vmul.f32 %v69, %v69
    %v204 = vmul.f32 %v70, %v70
    %v205 = vmul.f32 %v71, %v71
    %v206 = vmul.f32 %v72, %v72
    %v207 = vmul.f32 %v73, %v73
    %v208 = vmul.f32 %v74, %v74
    %v209 = vmul.f32 %v75, %v75
    %v210 = vmul.f32 %v76, %v76
    %v211 = vmul.f32 %v77, %v77
    %v212 = vmul.f32 %v78, %v78
    %v213 = vmul.f32 %v79, %v79
    %v214 = vmul.f32 %v80, %v80
    %v215 = vmul.f32 %v81, %v81
    %v216 = vmul.f32 %v82, %v82
    %v217 = vmul.f32 %v83, %v83
    %v218 = vmul.f32 %v84, %v84
    %v219 = vmul.f32 %v85, %v85
    %v220 = vmul.f32 %v86, %v86
    %v221 = vmul.f32 %v87, %v87
    %v222 = vmul.f32 %v88, %v88
    %v223 = vmul.f32 %v89, %v89
    %v224 = vmul.f32 %v90, %v90
    %v225 = vmul.f32 %v91, %v91
    %v226 = vadd.f32 %v162, %v163
    %v227 = vadd.f32 %v226, %v164
    %v228 = vadd.f32 %v227, %v165
    %v229 = vadd.f32 %v228, %v166
    %v230 = vadd.f32 %v229, %v167
    %v231 = vadd.f32 %v230, %v168
    %v232 = vadd.f32 %v231, %v169
    %v233 = vadd.f32 %v232, %v170
    %v234 = vadd.f32 %v233, %v171
    %v235 = vadd.f32 %v234, %v172
    %v236 = vadd.f32 %v235, %v173
    %v237 = vadd.f32 %v236, %v174
    %v238 = vadd.f32 %v237, %v175
    %v239 = vadd.f32 %v238, %v176
    %v240 = vadd.f32 %v239, %v177
    %v241 = vadd.f32 %v240, %v178
    %v242 = vadd.f32 %v241, %v179
    %v243 = vadd.f32 %v242, %v180
    %v244 = vadd.f32 %v243, %v181
    %v245 = vadd.f32 %v244, %v182
    %v246 = vadd.f32 %v245, %v183
    %v247 = vadd.f32 %v246, %v184
    %v248 = vadd.f32 %v247, %v185
    %v249 = vadd.f32 %v248, %v186
    %v250 = vadd.f32 %v249, %v187
    %v251 = vadd.f32 %v250, %v188
    %v252 = vadd.f32 %v251, %v189
    %v253 = vadd.f32 %v252, %v190
    %v254 = vadd.f32 %v253, %v191
    %v255 = vadd.f32 %v254, %v192
    %v256 = vadd.f32 %v255, %v193
    %v257 = vadd.f32 %v256, %v194
    %v258 = vadd.f32 %v257, %v195
    %v259 = vadd.f32 %v258, %v196
    %v260 = vadd.f32 %v259, %v197
    %v261 = vadd.f32 %v260, %v198
    %v262 = vadd.f32 %v261, %v199
    %v263 = vadd.f32 %v262, %v200
    %v264 = vadd.f32 %v263, %v201
    %v265 = vadd.f32 %v264, %v202
    %v266 = vadd.f32 %v265, %v203
    %v267 = vadd.f32 %v266, %v204
    %v268 = vadd.f32 %v267, %v205
    %v269 = vadd.f32 %v268, %v206
    %v270 = vadd.f32 %v269, %v207
    %v271 = vadd.f32 %v270, %v208
    %v272 = vadd.f32 %v271, %v209
    %v273 = vadd.f32 %v272, %v210
    %v274 = vadd.f32 %v273, %v211
    %v275 = vadd.f32 %v274, %v212
    %v276 = vadd.f32 %v275, %v213
    %v277 = vadd.f32 %v276, %v214
    %v278 = vadd.f32 %v277, %v215
    %v279 = vadd.f32 %v278, %v216
    %v280 = vadd.f32 %v279, %v217
    %v281 = vadd.f32 %v280, %v218
    %v282 = vadd.f32 %v281, %v219
    %v283 = vadd.f32 %v282, %v220
    %v284 = vadd.f32 %v283, %v221
    %v285 = vadd.f32 %v284, %v222
    %v286 = vadd.f32 %v285, %v223
    %v287 = vadd.f32 %v286, %v224
    %v288 = vadd.f32 %v287, %v225
    %v289 = vrot.slane %v288, 4
    %v290 = vadd.f32 %v288, %v289
    %v291 = vrot.slane %v290, 2
    %v292 = vadd.f32 %v290, %v291
    %v293 = vrot.slane %v292, 1
    %v294 = vadd.f32 %v292, %v293
    %vm295 = vcmask 1040384
    %v296 = vsel %vm295, %v161, %v294
    %v297 = vadd.f32 %v92, %v296
    %298 = vst [vmem:[#allocation5] sm:$0x3] %v297
    // Predicated region
    $region14: #{tpu_custom_call.1} parent=1 // pred_check
      _
    $region15: #{tpu_custom_call.1} parent=1 // pred_check_branch
      %300 = sbr.rel (0) target = $region17
    $region16: #{tpu_custom_call.1} parent=1 // pred_region
      %s302 = ssub.s32 32, 32
      %303 = vsyncadd [#allocation4], %s302
      %s305 = sshll.u32 [#allocation5], 4
      %s306 = int_to_ptr.vmem [resolvable:$true] %s305
      %308 = dma.vmem_to_hbm [thread:$0]  %s306, 32, %s1, [#allocation4]
    $region17: #{tpu_custom_call.1} parent=1 // pred_fallthru
      _
    // Predicated region
    $region18: #{tpu_custom_call.1} parent=1 // pred_check
      _
    $region19: #{tpu_custom_call.1} parent=1 // pred_check_branch
      %310 = sbr.rel (0) target = $region21
    $region20: #{tpu_custom_call.1} parent=1 // pred_region
      %311 = dma.done [#allocation4], 32
    $region21: #{tpu_custom_call.1} parent=1 // pred_fallthru
      _
    %312 = vsyncpa [#allocation3], 1
    %313 = vsyncpa [#allocation4], 1

</llo_original>
